<compile_context>
chip_gen: v7x
topology: tpu7x:2x2x1
jax: 0.10.0
libtpu: 0.0.40
codegen_flags: <defaults>
</compile_context>

<pallas_src>
import jax
import jax.numpy as jnp
from jax.experimental import pallas as pl
from jax.experimental.pallas import tpu as pltpu


def _final_attention_kernel(x_ref, wq_ref, bq_ref, wk_ref, bk_ref, wv_ref, bv_ref,
                            v_ref, a_ref):
    """One batch block (Bb batch rows) per grid step.

    x_ref:   (Bb*T, D)  flattened input rows for this batch block
    wq_ref:  (D, H)     W_q^T        bq_ref: (1, H)
    wk_ref:  (D, H)     W_k^T        bk_ref: (1, H)
    wv_ref:  (D, H)     W_v^T        bv_ref: (1, H)
    v_ref:   (Bb, H)    attention output
    a_ref:   (Bb, T)    attention weights
    """
    Bb, T = a_ref.shape
    H = wq_ref.shape[1]

    x2 = x_ref[...]                                                   # (Bb*T, D)

    # K / V projections: single MXU matmuls with M = Bb*T, default (single
    # bf16 pass) precision, f32 accumulation.
    k = (jnp.dot(x2, wk_ref[...], preferred_element_type=jnp.float32)
         + bk_ref[...]).reshape(Bb, T, H)                             # (Bb, T, H)
    v = (jnp.dot(x2, wv_ref[...], preferred_element_type=jnp.float32)
         + bv_ref[...]).reshape(Bb, T, H)                             # (Bb, T, H)

    # Query projection touches only the last timestep of every batch row: a
    # strided (stride = T) sublane read of the already-resident VMEM block —
    # no extra HBM traffic, no wasted MXU rows.
    x_last = x_ref[pl.ds(T - 1, Bb, stride=T), :]                     # (Bb, D)
    q = (jnp.dot(x_last, wq_ref[...], preferred_element_type=jnp.float32)
         + bq_ref[...])                                               # (Bb, H)

    # Scores e[b, t] = <k[b, t, :], q[b, :]> on the VPU/XLU (an M=1 MXU matmul
    # per batch row would waste nearly-empty systolic passes).
    e = jnp.sum(k * q[:, None, :], axis=-1)                           # (Bb, T) f32

    # Softmax over the time axis (no 1/sqrt(H) scaling — matches the module).
    e_max = jnp.max(e, axis=-1, keepdims=True)
    p = jnp.exp(e - e_max)
    a = p * pl.reciprocal(jnp.sum(p, axis=-1, keepdims=True), approx=True)
    # TODO(synk): nn.Dropout on the attention weights is a train-time stochastic
    # op; this forward matches eval mode (identity).

    # Attention-weighted value: out[b, :] = sum_t a[b, t] * v[b, t, :] (VPU/XLU).
    out = jnp.sum(a[:, :, None] * v, axis=1)                          # (Bb, H)

    v_ref[...] = out.astype(v_ref.dtype)
    a_ref[...] = a.astype(a_ref.dtype)


def final_attention_qkv(x, w_q, b_q, w_k, b_k, w_v, b_v, *, batch_block=256):
    """x: (B, T, D).  w_*: (H, D) PyTorch-layout Linear weights, b_*: (H,).

    Returns (v: (B, H), a: (B, T)) — FinalAttentionQKV.forward with mask=None.
    """
    # TODO(synk): the mask != None branch (sigmoid time-decay with self.rate and
    # masked_fill) is not implemented; this kernel covers the mask=None path.
    B, T, D = x.shape
    H = w_q.shape[0]
    dtype = x.dtype

    # One-off glue (cheap XLA ops): transpose the (H, D) weights to (D, H) and
    # flatten the input to a (B*T, D) slab (contiguous reshape — no copy).  The
    # input keeps its native dtype (bf16 inputs run at native MXU rate).
    x2d = x.reshape(B * T, D)
    wq_t = jnp.transpose(w_q).astype(dtype)
    wk_t = jnp.transpose(w_k).astype(dtype)
    wv_t = jnp.transpose(w_v).astype(dtype)
    bq2 = b_q.astype(jnp.float32).reshape(1, H)
    bk2 = b_k.astype(jnp.float32).reshape(1, H)
    bv2 = b_v.astype(jnp.float32).reshape(1, H)

    # Batch tile: Bb batch rows (Bb*T projection rows) per grid step.
    #   * Bb*T = 2048 at the default is a multiple of both the 128 (v5e) and
    #     256 (v6e/v7x) MXU tiles.
    #   * double-buffered input block = 2*Bb*T*D*4B ~ 2 MiB at (T=8, D=32) f32,
    #     comfortably inside the scoped-VMEM defaults on v5e/v6e/v7x, so no
    #     explicit vmem_limit_bytes is needed at these shapes.
    #   * Bb must be a multiple of 8 (sublanes) unless it covers the whole batch.
    Bb = B if B <= batch_block else batch_block
    grid = (pl.cdiv(B, Bb),)

    v_out, a_out = pl.pallas_call(
        _final_attention_kernel,
        out_shape=(jax.ShapeDtypeStruct((B, H), dtype),
                   jax.ShapeDtypeStruct((B, T), jnp.float32)),
        grid=grid,
        in_specs=[
            pl.BlockSpec((Bb * T, D), lambda b: (b, 0)),   # x (flattened rows)
            pl.BlockSpec((D, H), lambda b: (0, 0)),        # W_q^T
            pl.BlockSpec((1, H), lambda b: (0, 0)),        # b_q
            pl.BlockSpec((D, H), lambda b: (0, 0)),        # W_k^T
            pl.BlockSpec((1, H), lambda b: (0, 0)),        # b_k
            pl.BlockSpec((D, H), lambda b: (0, 0)),        # W_v^T
            pl.BlockSpec((1, H), lambda b: (0, 0)),        # b_v
        ],
        out_specs=(
            pl.BlockSpec((Bb, H), lambda b: (b, 0)),       # attention output
            pl.BlockSpec((Bb, T), lambda b: (b, 0)),       # attention weights
        ),
        # The batch-block axis is embarrassingly parallel (megacore sharding on
        # v7x once the grid has >= 2 steps).
        compiler_params=pltpu.CompilerParams(
            dimension_semantics=("parallel",)),
    )(x2d, wq_t, bq2, wk_t, bk2, wv_t, bv2)

    return v_out, a_out


def _reference(x, w_q, b_q, w_k, b_k, w_v, b_v):
    """Pure-JAX f32 (highest precision) reference of the same forward pass."""
    q = jnp.matmul(x[:, -1, :], w_q.T, precision="highest") + b_q           # (B, H)
    k = jnp.einsum("btd,hd->bth", x, w_k, precision="highest") + b_k        # (B, T, H)
    v = jnp.einsum("btd,hd->bth", x, w_v, precision="highest") + b_v        # (B, T, H)
    e = jnp.einsum("bth,bh->bt", k, q, precision="highest")                 # (B, T)
    a = jax.nn.softmax(e, axis=-1)                                          # (B, T)
    out = jnp.einsum("bt,bth->bh", a, v, precision="highest")               # (B, H)
    return out, a


if __name__ == "__main__":
    # batch=2, time_step=8, attention_input_dim=32, attention_hidden_dim=32
    B, T, D, H = 2, 8, 32, 32

    key = jax.random.PRNGKey(0)
    kx, k1, k2, k3, k4, k5, k6 = jax.random.split(key, 7)
    x = jax.random.normal(kx, (B, T, D), dtype=jnp.float32)

    # PyTorch nn.Linear / kaiming_uniform_(a=sqrt(5)) bound = 1/sqrt(fan_in).
    bound = 1.0 / (D ** 0.5)
    w_q = jax.random.uniform(k1, (H, D), minval=-bound, maxval=bound, dtype=jnp.float32)
    w_k = jax.random.uniform(k2, (H, D), minval=-bound, maxval=bound, dtype=jnp.float32)
    w_v = jax.random.uniform(k3, (H, D), minval=-bound, maxval=bound, dtype=jnp.float32)
    b_q = jax.random.uniform(k4, (H,), minval=-bound, maxval=bound, dtype=jnp.float32)
    b_k = jax.random.uniform(k5, (H,), minval=-bound, maxval=bound, dtype=jnp.float32)
    b_v = jax.random.uniform(k6, (H,), minval=-bound, maxval=bound, dtype=jnp.float32)

    v_out, a_out = final_attention_qkv(x, w_q, b_q, w_k, b_k, w_v, b_v)
    v_out = jax.block_until_ready(v_out)
    a_out = jax.block_until_ready(a_out)

    v_ref, a_ref = _reference(x, w_q, b_q, w_k, b_k, w_v, b_v)
    assert v_out.shape == (B, H), v_out.shape
    assert a_out.shape == (B, T), a_out.shape

    err_v = float(jnp.max(jnp.abs(v_out - v_ref)))
    err_a = float(jnp.max(jnp.abs(a_out - a_ref)))
    # The kernel's matmuls run at default (single bf16 pass) MXU precision per
    # the perf guidance; vs. an f32 "highest" reference the expected deviation
    # at these O(1) magnitudes is O(1e-3..1e-2), so assert a bf16-level bound.
    assert err_v < 2e-2 and err_a < 2e-2, f"mismatch: v={err_v}, a={err_a}"

    print("KERNEL_OK")
</pallas_src>

<mosaic_0001>
module attributes {stable_mosaic.version = 11 : i64} {
  func.func @_final_attention_kernel(%arg0: i32, %arg1: memref<16x32xf32, #tpu.memory_space<vmem>>, %arg2: memref<32x32xf32, #tpu.memory_space<vmem>>, %arg3: memref<1x32xf32, #tpu.memory_space<vmem>>, %arg4: memref<32x32xf32, #tpu.memory_space<vmem>>, %arg5: memref<1x32xf32, #tpu.memory_space<vmem>>, %arg6: memref<32x32xf32, #tpu.memory_space<vmem>>, %arg7: memref<1x32xf32, #tpu.memory_space<vmem>>, %arg8: memref<2x32xf32, #tpu.memory_space<vmem>>, %arg9: memref<2x8xf32, #tpu.memory_space<vmem>>) attributes {dimension_semantics = [#tpu.dimension_semantics<parallel>], iteration_bounds = array<i64: 1>, scalar_prefetch = 0 : i64, scratch_operands = 0 : i64, tpu.core_type = #tpu.core_type<tc>, window_params = [{transform_indices = @transform_0, window_bounds = array<i64: 16, 32>}, {pipeline_mode = #tpu.pipeline_mode<synchronous>, transform_indices = @transform_1, window_bounds = array<i64: 32, 32>}, {pipeline_mode = #tpu.pipeline_mode<synchronous>, transform_indices = @transform_2, window_bounds = array<i64: 1, 32>}, {pipeline_mode = #tpu.pipeline_mode<synchronous>, transform_indices = @transform_3, window_bounds = array<i64: 32, 32>}, {pipeline_mode = #tpu.pipeline_mode<synchronous>, transform_indices = @transform_4, window_bounds = array<i64: 1, 32>}, {pipeline_mode = #tpu.pipeline_mode<synchronous>, transform_indices = @transform_5, window_bounds = array<i64: 32, 32>}, {pipeline_mode = #tpu.pipeline_mode<synchronous>, transform_indices = @transform_6, window_bounds = array<i64: 1, 32>}, {transform_indices = @transform_7, window_bounds = array<i64: 2, 32>}, {transform_indices = @transform_8, window_bounds = array<i64: 2, 8>}]} {
    %c0 = arith.constant 0 : index
    %c0_0 = arith.constant 0 : index
    %0 = vector.load %arg1[%c0, %c0_0] : memref<16x32xf32, #tpu.memory_space<vmem>>, vector<16x32xf32>
    %c0_1 = arith.constant 0 : index
    %c0_2 = arith.constant 0 : index
    %1 = vector.load %arg4[%c0_1, %c0_2] : memref<32x32xf32, #tpu.memory_space<vmem>>, vector<32x32xf32>
    %cst = arith.constant dense<0.000000e+00> : vector<16x32xf32>
    %2 = tpu.matmul %0, %1, %cst {dimension_numbers = #tpu.dot_dimension_numbers<[1], [0], [0], [1], [0, 0, 1, 1], [], []>} : vector<16x32xf32>, vector<32x32xf32>, vector<16x32xf32> -> vector<16x32xf32>
    %c0_3 = arith.constant 0 : index
    %c0_4 = arith.constant 0 : index
    %3 = vector.load %arg5[%c0_3, %c0_4] : memref<1x32xf32, #tpu.memory_space<vmem>>, vector<1x32xf32>
    %4 = vector.broadcast %3 : vector<1x32xf32> to vector<16x32xf32>
    %5 = arith.addf %2, %4 : vector<16x32xf32>
    %6 = vector.shape_cast %5 : vector<16x32xf32> to vector<2x8x32xf32>
    %c0_5 = arith.constant 0 : index
    %c0_6 = arith.constant 0 : index
    %7 = vector.load %arg6[%c0_5, %c0_6] : memref<32x32xf32, #tpu.memory_space<vmem>>, vector<32x32xf32>
    %cst_7 = arith.constant dense<0.000000e+00> : vector<16x32xf32>
    %8 = tpu.matmul %0, %7, %cst_7 {dimension_numbers = #tpu.dot_dimension_numbers<[1], [0], [0], [1], [0, 0, 1, 1], [], []>} : vector<16x32xf32>, vector<32x32xf32>, vector<16x32xf32> -> vector<16x32xf32>
    %c0_8 = arith.constant 0 : index
    %c0_9 = arith.constant 0 : index
    %9 = vector.load %arg7[%c0_8, %c0_9] : memref<1x32xf32, #tpu.memory_space<vmem>>, vector<1x32xf32>
    %10 = vector.broadcast %9 : vector<1x32xf32> to vector<16x32xf32>
    %11 = arith.addf %8, %10 : vector<16x32xf32>
    %12 = vector.shape_cast %11 : vector<16x32xf32> to vector<2x8x32xf32>
    %c7 = arith.constant 7 : index
    %c0_10 = arith.constant 0 : index
    %13 = tpu.strided_load %arg1[%c7, %c0_10] {strides = array<i32: 8, 1>} : memref<16x32xf32, #tpu.memory_space<vmem>>, vector<2x32xf32>
    %c0_11 = arith.constant 0 : index
    %c0_12 = arith.constant 0 : index
    %14 = vector.load %arg2[%c0_11, %c0_12] : memref<32x32xf32, #tpu.memory_space<vmem>>, vector<32x32xf32>
    %cst_13 = arith.constant dense<0.000000e+00> : vector<2x32xf32>
    %15 = tpu.matmul %13, %14, %cst_13 {dimension_numbers = #tpu.dot_dimension_numbers<[1], [0], [0], [1], [0, 0, 1, 1], [], []>} : vector<2x32xf32>, vector<32x32xf32>, vector<2x32xf32> -> vector<2x32xf32>
    %c0_14 = arith.constant 0 : index
    %c0_15 = arith.constant 0 : index
    %16 = vector.load %arg3[%c0_14, %c0_15] : memref<1x32xf32, #tpu.memory_space<vmem>>, vector<1x32xf32>
    %17 = vector.broadcast %16 : vector<1x32xf32> to vector<2x32xf32>
    %18 = arith.addf %15, %17 : vector<2x32xf32>
    %19 = vector.shape_cast %18 : vector<2x32xf32> to vector<2x1x32xf32>
    %20 = vector.broadcast %19 : vector<2x1x32xf32> to vector<2x8x32xf32>
    %21 = arith.mulf %6, %20 : vector<2x8x32xf32>
    %cst_16 = arith.constant dense<0.000000e+00> : vector<2x8xf32>
    %22 = vector.multi_reduction <add>, %21, %cst_16 [2] : vector<2x8x32xf32> to vector<2x8xf32>
    %cst_17 = arith.constant dense<0xFF800000> : vector<2xf32>
    %23 = vector.multi_reduction <maximumf>, %22, %cst_17 [1] : vector<2x8xf32> to vector<2xf32>
    %24 = vector.shape_cast %23 : vector<2xf32> to vector<2x1xf32>
    %25 = vector.broadcast %24 : vector<2x1xf32> to vector<2x8xf32>
    %26 = arith.subf %22, %25 : vector<2x8xf32>
    %27 = math.exp %26 : vector<2x8xf32>
    %cst_18 = arith.constant dense<0.000000e+00> : vector<2xf32>
    %28 = vector.multi_reduction <add>, %27, %cst_18 [1] : vector<2x8xf32> to vector<2xf32>
    %29 = vector.shape_cast %28 : vector<2xf32> to vector<2x1xf32>
    %30 = tpu.reciprocal %29 {approx = true} : vector<2x1xf32> -> vector<2x1xf32>
    %31 = vector.broadcast %30 : vector<2x1xf32> to vector<2x8xf32>
    %32 = arith.mulf %27, %31 : vector<2x8xf32>
    %33 = vector.shape_cast %32 : vector<2x8xf32> to vector<2x8x1xf32>
    %34 = vector.broadcast %33 : vector<2x8x1xf32> to vector<2x8x32xf32>
    %35 = arith.mulf %34, %12 : vector<2x8x32xf32>
    %cst_19 = arith.constant dense<0.000000e+00> : vector<2x32xf32>
    %36 = vector.multi_reduction <add>, %35, %cst_19 [1] : vector<2x8x32xf32> to vector<2x32xf32>
    %c0_20 = arith.constant 0 : index
    %c0_21 = arith.constant 0 : index
    %37 = vector.load %arg8[%c0_20, %c0_21] : memref<2x32xf32, #tpu.memory_space<vmem>>, vector<2x32xf32>
    tpu.vector_store %arg8[%c0_20, %c0_21], %36 {strides = array<i32>} : memref<2x32xf32, #tpu.memory_space<vmem>>, vector<2x32xf32>,
    %c0_22 = arith.constant 0 : index
    %c0_23 = arith.constant 0 : index
    %38 = vector.load %arg9[%c0_22, %c0_23] : memref<2x8xf32, #tpu.memory_space<vmem>>, vector<2x8xf32>
    tpu.vector_store %arg9[%c0_22, %c0_23], %32 {strides = array<i32>} : memref<2x8xf32, #tpu.memory_space<vmem>>, vector<2x8xf32>,
    return
  }
  func.func @transform_0(%arg0: i32) -> (i32, i32) {
    %c0_i32 = arith.constant 0 : i32
    %c0_i32_0 = arith.constant 0 : i32
    return %arg0, %c0_i32 : i32, i32
  }
  func.func @transform_1(%arg0: i32) -> (i32, i32) {
    %c0_i32 = arith.constant 0 : i32
    %c0_i32_0 = arith.constant 0 : i32
    %c0_i32_1 = arith.constant 0 : i32
    return %c0_i32, %c0_i32_0 : i32, i32
  }
  func.func @transform_2(%arg0: i32) -> (i32, i32) {
    %c0_i32 = arith.constant 0 : i32
    %c0_i32_0 = arith.constant 0 : i32
    %c0_i32_1 = arith.constant 0 : i32
    return %c0_i32, %c0_i32_0 : i32, i32
  }
  func.func @transform_3(%arg0: i32) -> (i32, i32) {
    %c0_i32 = arith.constant 0 : i32
    %c0_i32_0 = arith.constant 0 : i32
    %c0_i32_1 = arith.constant 0 : i32
    return %c0_i32, %c0_i32_0 : i32, i32
  }
  func.func @transform_4(%arg0: i32) -> (i32, i32) {
    %c0_i32 = arith.constant 0 : i32
    %c0_i32_0 = arith.constant 0 : i32
    %c0_i32_1 = arith.constant 0 : i32
    return %c0_i32, %c0_i32_0 : i32, i32
  }
  func.func @transform_5(%arg0: i32) -> (i32, i32) {
    %c0_i32 = arith.constant 0 : i32
    %c0_i32_0 = arith.constant 0 : i32
    %c0_i32_1 = arith.constant 0 : i32
    return %c0_i32, %c0_i32_0 : i32, i32
  }
  func.func @transform_6(%arg0: i32) -> (i32, i32) {
    %c0_i32 = arith.constant 0 : i32
    %c0_i32_0 = arith.constant 0 : i32
    %c0_i32_1 = arith.constant 0 : i32
    return %c0_i32, %c0_i32_0 : i32, i32
  }
  func.func @transform_7(%arg0: i32) -> (i32, i32) {
    %c0_i32 = arith.constant 0 : i32
    %c0_i32_0 = arith.constant 0 : i32
    return %arg0, %c0_i32 : i32, i32
  }
  func.func @transform_8(%arg0: i32) -> (i32, i32) {
    %c0_i32 = arith.constant 0 : i32
    %c0_i32_0 = arith.constant 0 : i32
    return %arg0, %c0_i32 : i32, i32
  }
}

</mosaic_0001>

<llo_original>
// kernel: tpu_custom_call.1
$region0: #{tpu_custom_call.1}
  #allocation0 [shape = 'u32[]', space=smem, size = 0x4, offset = 0x4, fixed_abs, tag = 'smem constant byte address 0x4 - core index']
  #allocation1 [shape = 'u32[144,128]{1,0:T(1,128)}', space=vmem, size = 0x12000, scoped, tag = 'internal scratch']
  %s0 = inlined_call_operand.hbm [shape: f32[16,32], index: 0, kind: input, shape index: {}]
  %s1 = inlined_call_operand.hbm [shape: f32[32,32], index: 1, kind: input, shape index: {}]
  %s2 = inlined_call_operand.vmem [shape: f32[1,32], index: 2, kind: input, shape index: {}]
  %s3 = inlined_call_operand.hbm [shape: f32[32,32], index: 3, kind: input, shape index: {}]
  %s4 = inlined_call_operand.vmem [shape: f32[1,32], index: 4, kind: input, shape index: {}]
  %s5 = inlined_call_operand.hbm [shape: f32[32,32], index: 5, kind: input, shape index: {}]
  %s6 = inlined_call_operand.vmem [shape: f32[1,32], index: 6, kind: input, shape index: {}]
  %s7 = inlined_call_operand.hbm [shape: f32[2,32], index: 7, kind: output, shape index: {0}]
  %s8 = inlined_call_operand.hbm [shape: f32[2,8], index: 8, kind: output, shape index: {1}]
  %9 = xla_tuple %s7, %s8
  %s10 = sld [smem:[#allocation0]]
  $region62: #{tpu_custom_call.1} parent=0
    _
  %s12 = ssub.s32 1, %s10
  %s13 = scalar_select 0, %s12, %s10
  $region1: #{tpu_custom_call.1} parent=0
    #allocation2 [shape = 'u8[8192]{0}', space=vmem, size = 0x2000, scoped, tag = 'input window, operand 0, single buffered']
    #allocation3 [shape = 's32[1]{0}', space=sflag, size = 0x4, scoped, tag = 'scoped memory for tpu_custom_call.1']
    #allocation4 [shape = 's32[1]{0}', space=sflag, size = 0x4, scoped, tag = 'scoped memory for tpu_custom_call.1']
    #allocation5 [shape = 'u8[16384]{0}', space=vmem, size = 0x4000, scoped, tag = 'input window, operand 1, single buffered']
    #allocation6 [shape = 's32[1]{0}', space=sflag, size = 0x4, scoped, tag = 'scoped memory for tpu_custom_call.1']
    #allocation7 [shape = 'u8[16384]{0}', space=vmem, size = 0x4000, scoped, tag = 'input window, operand 3, single buffered']
    #allocation8 [shape = 'u8[16384]{0}', space=vmem, size = 0x4000, scoped, tag = 'input window, operand 5, single buffered']
    #allocation9 [shape = 's32[1]{0}', space=sflag, size = 0x4, scoped, tag = 'scoped memory for tpu_custom_call.1']
    #allocation10 [shape = 'u8[1024]{0}', space=vmem, size = 0x400, scoped, tag = 'output window, operand 0, single buffered']
    #allocation11 [shape = 'u8[1024]{0}', space=vmem, size = 0x400, scoped, tag = 'output window, operand 1, single buffered']
    #allocation12 [shape = 's32[1]{0}', space=sflag, size = 0x4, scoped, tag = 'scoped memory for tpu_custom_call.1']
    %14 = vsyncpa [#allocation3], 0
    %15 = vsyncpa [#allocation6], 0
    %16 = vsyncpa [#allocation9], 0
    %17 = vsyncpa [#allocation4], 0
    %18 = vsyncpa [#allocation12], 0
    // Predicated region
    $region2: #{tpu_custom_call.1} parent=1 // pred_check
      _
    $region3: #{tpu_custom_call.1} parent=1 // pred_check_branch
      %20 = sbr.rel (0) target = $region5
    $region4: #{tpu_custom_call.1} parent=1 // pred_region
      %s22 = ssub.s32 256, 256
      %23 = vsyncadd [#allocation3], %s22
      %s24 = sshll.u32 [#allocation2], 4
      %s25 = int_to_ptr.vmem [resolvable:$true] %s24
      %30 = dma.hbm_to_vmem [thread:$0]  %s0, 256, %s25, [#allocation3], 128, 128, 8
    $region5: #{tpu_custom_call.1} parent=1 // pred_fallthru
      _
    // Predicated region
    $region6: #{tpu_custom_call.1} parent=1 // pred_check
      _
    $region7: #{tpu_custom_call.1} parent=1 // pred_check_branch
      %32 = sbr.rel (0) target = $region9
    $region8: #{tpu_custom_call.1} parent=1 // pred_region
      %s34 = ssub.s32 512, 512
      %35 = vsyncadd [#allocation6], %s34
      %s36 = sshll.u32 [#allocation5], 4
      %s37 = int_to_ptr.vmem [resolvable:$true] %s36
      %42 = dma.hbm_to_vmem [thread:$0]  %s1, 512, %s37, [#allocation6], 128, 128, 8
    $region9: #{tpu_custom_call.1} parent=1 // pred_fallthru
      _
    // Predicated region
    $region10: #{tpu_custom_call.1} parent=1 // pred_check
      _
    $region11: #{tpu_custom_call.1} parent=1 // pred_check_branch
      %44 = sbr.rel (0) target = $region13
    $region12: #{tpu_custom_call.1} parent=1 // pred_region
      _
    $region13: #{tpu_custom_call.1} parent=1 // pred_fallthru
      _
    // Predicated region
    $region14: #{tpu_custom_call.1} parent=1 // pred_check
      _
    $region15: #{tpu_custom_call.1} parent=1 // pred_check_branch
      %46 = sbr.rel (0) target = $region17
    $region16: #{tpu_custom_call.1} parent=1 // pred_region
      %s48 = ssub.s32 512, 512
      %49 = vsyncadd [#allocation6], %s48
      %s50 = sshll.u32 [#allocation7], 4
      %s51 = int_to_ptr.vmem [resolvable:$true] %s50
      %56 = dma.hbm_to_vmem [thread:$0]  %s3, 512, %s51, [#allocation6], 128, 128, 8
    $region17: #{tpu_custom_call.1} parent=1 // pred_fallthru
      _
    // Predicated region
    $region18: #{tpu_custom_call.1} parent=1 // pred_check
      _
    $region19: #{tpu_custom_call.1} parent=1 // pred_check_branch
      %58 = sbr.rel (0) target = $region21
    $region20: #{tpu_custom_call.1} parent=1 // pred_region
      _
    $region21: #{tpu_custom_call.1} parent=1 // pred_fallthru
      _
    // Predicated region
    $region22: #{tpu_custom_call.1} parent=1 // pred_check
      _
    $region23: #{tpu_custom_call.1} parent=1 // pred_check_branch
      %60 = sbr.rel (0) target = $region25
    $region24: #{tpu_custom_call.1} parent=1 // pred_region
      %s62 = ssub.s32 512, 512
      %63 = vsyncadd [#allocation9], %s62
      %s64 = sshll.u32 [#allocation8], 4
      %s65 = int_to_ptr.vmem [resolvable:$true] %s64
      %70 = dma.hbm_to_vmem [thread:$0]  %s5, 512, %s65, [#allocation9], 128, 128, 8
    $region25: #{tpu_custom_call.1} parent=1 // pred_fallthru
      _
    // Predicated region
    $region26: #{tpu_custom_call.1} parent=1 // pred_check
      _
    $region27: #{tpu_custom_call.1} parent=1 // pred_check_branch
      %72 = sbr.rel (0) target = $region29
    $region28: #{tpu_custom_call.1} parent=1 // pred_region
      _
    $region29: #{tpu_custom_call.1} parent=1 // pred_fallthru
      _
    // Predicated region
    $region30: #{tpu_custom_call.1} parent=1 // pred_check
      _
    $region31: #{tpu_custom_call.1} parent=1 // pred_check_branch
      %74 = sbr.rel (0) target = $region33
    $region32: #{tpu_custom_call.1} parent=1 // pred_region
      %75 = dma.done [#allocation3], 256
    $region33: #{tpu_custom_call.1} parent=1 // pred_fallthru
      _
    // Predicated region
    $region34: #{tpu_custom_call.1} parent=1 // pred_check
      _
    $region35: #{tpu_custom_call.1} parent=1 // pred_check_branch
      %77 = sbr.rel (0) target = $region37
    $region36: #{tpu_custom_call.1} parent=1 // pred_region
      %78 = dma.done [#allocation6], 512
    $region37: #{tpu_custom_call.1} parent=1 // pred_fallthru
      _
    // Predicated region
    $region38: #{tpu_custom_call.1} parent=1 // pred_check
      _
    $region39: #{tpu_custom_call.1} parent=1 // pred_check_branch
      %80 = sbr.rel (0) target = $region41
    $region40: #{tpu_custom_call.1} parent=1 // pred_region
      %81 = dma.done [#allocation6], 512
    $region41: #{tpu_custom_call.1} parent=1 // pred_fallthru
      _
    // Predicated region
    $region42: #{tpu_custom_call.1} parent=1 // pred_check
      _
    $region43: #{tpu_custom_call.1} parent=1 // pred_check_branch
      %83 = sbr.rel (0) target = $region45
    $region44: #{tpu_custom_call.1} parent=1 // pred_region
      %84 = dma.done [#allocation9], 512
    $region45: #{tpu_custom_call.1} parent=1 // pred_fallthru
      _
    %v85 = vld [vmem:[#allocation2] sm:$0xff]
    %v86 = vld [vmem:[#allocation2 + $0x8] sm:$0xff]
    %v87 = vld [vmem:[#allocation7] sm:$0xff]
    %v88 = vld [vmem:[#allocation7 + $0x8] sm:$0xff]
    %v89 = vld [vmem:[#allocation7 + $0x10] sm:$0xff]
    %v90 = vld [vmem:[#allocation7 + $0x18] sm:$0xff]
    %v91 = vld [vmem:[%s4] sm:$0x1]
    %v93 = vlaneseq
    %v94 = vshrl.u32 %v93, 7
    %v95 = vsub.s32 0, %v94
    %v96 = vrot.slane %v91, %v95
    %vm98 = vcmask 261120
    %v100 = vsel %vm98, %v85, 0
    %v103 = vsel %vm98, %v86, 0
    %105 = vmatprep.subr.mxu0 0.0
    %106 = vmatpush1.msra.mxu0 %v87
    %107 = vmatprep.subr.mxu0 0.0
    %108 = vmatpush1.msra.mxu0 %v88
    %109 = vmatprep.subr.mxu0 0.0
    %110 = vmatpush1.msra.mxu0 %v89
    %111 = vmatprep.subr.mxu0 0.0
    %112 = vmatpush1.msra.mxu0 %v90
    %113 = vmatprep.subr.mxu0 0.0
    %114 = vmatpush1.msra.mxu0 0.0
    %115 = vmatprep.subr.mxu0 0.0
    %116 = vmatpush1.msra.mxu0 0.0
    %117 = vmatprep.subr.mxu0 0.0
    %118 = vmatpush1.msra.mxu0 0.0
    %119 = vmatprep.subr.mxu0 0.0
    %120 = vmatpush1.msra.mxu0 0.0
    %121 = vmatprep.subr.mxu0 0.0
    %122 = vmatpush1.msra.mxu0 0.0
    %123 = vmatprep.subr.mxu0 0.0
    %124 = vmatpush1.msra.mxu0 0.0
    %125 = vmatprep.subr.mxu0 0.0
    %126 = vmatpush1.msra.mxu0 0.0
    %127 = vmatprep.subr.mxu0 0.0
    %128 = vmatpush1.msra.mxu0 0.0
    %129 = vmatprep.subr.mxu0 0.0
    %130 = vmatpush1.msra.mxu0 0.0
    %131 = vmatprep.subr.mxu0 0.0
    %132 = vmatpush1.msra.mxu0 0.0
    %133 = vmatprep.subr.mxu0 0.0
    %134 = vmatpush1.msra.mxu0 0.0
    %135 = vmatprep.subr.mxu0 0.0
    %136 = vmatpush1.msra.mxu0 0.0
    %137 = vmatprep.subr.mxu0 0.0
    %138 = vmatpush1.msra.mxu0 0.0
    %139 = vmatprep.subr.mxu0 0.0
    %140 = vmatpush1.msra.mxu0 0.0
    %141 = vmatprep.subr.mxu0 0.0
    %142 = vmatpush1.msra.mxu0 0.0
    %143 = vmatprep.subr.mxu0 0.0
    %144 = vmatpush1.msra.mxu0 0.0
    %145 = vmatprep.subr.mxu0 0.0
    %146 = vmatpush1.msra.mxu0 0.0
    %147 = vmatprep.subr.mxu0 0.0
    %148 = vmatpush1.msra.mxu0 0.0
    %149 = vmatprep.subr.mxu0 0.0
    %150 = vmatpush1.msra.mxu0 0.0
    %151 = vmatprep.subr.mxu0 0.0
    %152 = vmatpush1.msra.mxu0 0.0
    %153 = vmatprep.subr.mxu0 0.0
    %154 = vmatpush1.msra.mxu0 0.0
    %155 = vmatprep.subr.mxu0 0.0
    %156 = vmatpush1.msra.mxu0 0.0
    %157 = vmatprep.subr.mxu0 0.0
    %158 = vmatpush1.msra.mxu0 0.0
    %159 = vmatprep.subr.mxu0 0.0
    %160 = vmatpush1.msra.mxu0 0.0
    %161 = vmatprep.subr.mxu0 0.0
    %162 = vmatpush1.msra.mxu0 0.0
    %163 = vmatprep.subr.mxu0 0.0
    %164 = vmatpush1.msra.mxu0 0.0
    %165 = vmatprep.subr.mxu0 0.0
    %166 = vmatpush1.msra.mxu0 0.0
    %167 = vmatprep.subr.mxu0 0.0
    %168 = vmatpush1.msra.mxu0 0.0
    %169 = vmatprep.mubr.f32.mxu0 0.0
    %170 = vmatmul.mubr.f32.gmra.mrb[0].mxu0 %v100
    %v171 = vpop.f32.mrb[0].mxu0
    %v172 = vadd.f32 %v96, %v171
    %v173 = vpop.f32.mrb[0].mxu0
    %174 = vmatprep.mubr.f32.mxu0 0.0
    %175 = vmatmul.mubr.f32.gmra.mrb[0].mxu0 %v103
    %v176 = vpop.f32.mrb[0].mxu0
    %v177 = vadd.f32 %v96, %v176
    %v178 = vpop.f32.mrb[0].mxu0
    %179 = vdwg.mxu0
    %v180 = vld [vmem:[#allocation8] sm:$0xff]
    %v181 = vld [vmem:[#allocation8 + $0x8] sm:$0xff]
    %v182 = vld [vmem:[#allocation8 + $0x10] sm:$0xff]
    %v183 = vld [vmem:[#allocation8 + $0x18] sm:$0xff]
    %v184 = vld [vmem:[%s6] sm:$0x1]
    %v186 = vlaneseq
    %v187 = vshrl.u32 %v186, 7
    %v188 = vsub.s32 0, %v187
    %v189 = vrot.slane %v184, %v188
    %191 = vmatprep.subr.mxu0 0.0
    %192 = vmatpush1.msra.mxu0 %v180
    %193 = vmatprep.subr.mxu0 0.0
    %194 = vmatpush1.msra.mxu0 %v181
    %195 = vmatprep.subr.mxu0 0.0
    %196 = vmatpush1.msra.mxu0 %v182
    %197 = vmatprep.subr.mxu0 0.0
    %198 = vmatpush1.msra.mxu0 %v183
    %199 = vmatprep.subr.mxu0 0.0
    %200 = vmatpush1.msra.mxu0 0.0
    %201 = vmatprep.subr.mxu0 0.0
    %202 = vmatpush1.msra.mxu0 0.0
    %203 = vmatprep.subr.mxu0 0.0
    %204 = vmatpush1.msra.mxu0 0.0
    %205 = vmatprep.subr.mxu0 0.0
    %206 = vmatpush1.msra.mxu0 0.0
    %207 = vmatprep.subr.mxu0 0.0
    %208 = vmatpush1.msra.mxu0 0.0
    %209 = vmatprep.subr.mxu0 0.0
    %210 = vmatpush1.msra.mxu0 0.0
    %211 = vmatprep.subr.mxu0 0.0
    %212 = vmatpush1.msra.mxu0 0.0
    %213 = vmatprep.subr.mxu0 0.0
    %214 = vmatpush1.msra.mxu0 0.0
    %215 = vmatprep.subr.mxu0 0.0
    %216 = vmatpush1.msra.mxu0 0.0
    %217 = vmatprep.subr.mxu0 0.0
    %218 = vmatpush1.msra.mxu0 0.0
    %219 = vmatprep.subr.mxu0 0.0
    %220 = vmatpush1.msra.mxu0 0.0
    %221 = vmatprep.subr.mxu0 0.0
    %222 = vmatpush1.msra.mxu0 0.0
    %223 = vmatprep.subr.mxu0 0.0
    %224 = vmatpush1.msra.mxu0 0.0
    %225 = vmatprep.subr.mxu0 0.0
    %226 = vmatpush1.msra.mxu0 0.0
    %227 = vmatprep.subr.mxu0 0.0
    %228 = vmatpush1.msra.mxu0 0.0
    %229 = vmatprep.subr.mxu0 0.0
    %230 = vmatpush1.msra.mxu0 0.0
    %231 = vmatprep.subr.mxu0 0.0
    %232 = vmatpush1.msra.mxu0 0.0
    %233 = vmatprep.subr.mxu0 0.0
    %234 = vmatpush1.msra.mxu0 0.0
    %235 = vmatprep.subr.mxu0 0.0
    %236 = vmatpush1.msra.mxu0 0.0
    %237 = vmatprep.subr.mxu0 0.0
    %238 = vmatpush1.msra.mxu0 0.0
    %239 = vmatprep.subr.mxu0 0.0
    %240 = vmatpush1.msra.mxu0 0.0
    %241 = vmatprep.subr.mxu0 0.0
    %242 = vmatpush1.msra.mxu0 0.0
    %243 = vmatprep.subr.mxu0 0.0
    %244 = vmatpush1.msra.mxu0 0.0
    %245 = vmatprep.subr.mxu0 0.0
    %246 = vmatpush1.msra.mxu0 0.0
    %247 = vmatprep.subr.mxu0 0.0
    %248 = vmatpush1.msra.mxu0 0.0
    %249 = vmatprep.subr.mxu0 0.0
    %250 = vmatpush1.msra.mxu0 0.0
    %251 = vmatprep.subr.mxu0 0.0
    %252 = vmatpush1.msra.mxu0 0.0
    %253 = vmatprep.subr.mxu0 0.0
    %254 = vmatpush1.msra.mxu0 0.0
    %255 = vmatprep.mubr.f32.mxu0 0.0
    %256 = vmatmul.mubr.f32.gmra.mrb[0].mxu0 %v100
    %v257 = vpop.f32.mrb[0].mxu0
    %v258 = vadd.f32 %v189, %v257
    %v259 = vpop.f32.mrb[0].mxu0
    %260 = vmatprep.mubr.f32.mxu0 0.0
    %261 = vmatmul.mubr.f32.gmra.mrb[0].mxu0 %v103
    %v262 = vpop.f32.mrb[0].mxu0
    %v263 = vadd.f32 %v189, %v262
    %v264 = vpop.f32.mrb[0].mxu0
    %265 = vdwg.mxu0
    %s266 = scalar_lea.vmem [#allocation2], 7
    %v267 = vld [vmem:[%s266] ss:$8 sm:$0x3]
    %v268 = vld [vmem:[#allocation5] sm:$0xff]
    %v269 = vld [vmem:[#allocation5 + $0x8] sm:$0xff]
    %v270 = vld [vmem:[#allocation5 + $0x10] sm:$0xff]
    %v271 = vld [vmem:[#allocation5 + $0x18] sm:$0xff]
    %v272 = vld [vmem:[%s2] sm:$0x1]
    %v274 = vlaneseq
    %v275 = vshrl.u32 %v274, 7
    %v276 = vsub.s32 0, %v275
    %v277 = vrot.slane %v272, %v276
    %v280 = vsel %vm98, %v267, 0
    %282 = vmatprep.subr.mxu0 0.0
    %283 = vmatpush1.msra.mxu0 %v268
    %284 = vmatprep.subr.mxu0 0.0
    %285 = vmatpush1.msra.mxu0 %v269
    %286 = vmatprep.subr.mxu0 0.0
    %287 = vmatpush1.msra.mxu0 %v270
    %288 = vmatprep.subr.mxu0 0.0
    %289 = vmatpush1.msra.mxu0 %v271
    %290 = vmatprep.subr.mxu0 0.0
    %291 = vmatpush1.msra.mxu0 0.0
    %292 = vmatprep.subr.mxu0 0.0
    %293 = vmatpush1.msra.mxu0 0.0
    %294 = vmatprep.subr.mxu0 0.0
    %295 = vmatpush1.msra.mxu0 0.0
    %296 = vmatprep.subr.mxu0 0.0
    %297 = vmatpush1.msra.mxu0 0.0
    %298 = vmatprep.subr.mxu0 0.0
    %299 = vmatpush1.msra.mxu0 0.0
    %300 = vmatprep.subr.mxu0 0.0
    %301 = vmatpush1.msra.mxu0 0.0
    %302 = vmatprep.subr.mxu0 0.0
    %303 = vmatpush1.msra.mxu0 0.0
    %304 = vmatprep.subr.mxu0 0.0
    %305 = vmatpush1.msra.mxu0 0.0
    %306 = vmatprep.subr.mxu0 0.0
    %307 = vmatpush1.msra.mxu0 0.0
    %308 = vmatprep.subr.mxu0 0.0
    %309 = vmatpush1.msra.mxu0 0.0
    %310 = vmatprep.subr.mxu0 0.0
    %311 = vmatpush1.msra.mxu0 0.0
    %312 = vmatprep.subr.mxu0 0.0
    %313 = vmatpush1.msra.mxu0 0.0
    %314 = vmatprep.subr.mxu0 0.0
    %315 = vmatpush1.msra.mxu0 0.0
    %316 = vmatprep.subr.mxu0 0.0
    %317 = vmatpush1.msra.mxu0 0.0
    %318 = vmatprep.subr.mxu0 0.0
    %319 = vmatpush1.msra.mxu0 0.0
    %320 = vmatprep.subr.mxu0 0.0
    %321 = vmatpush1.msra.mxu0 0.0
    %322 = vmatprep.subr.mxu0 0.0
    %323 = vmatpush1.msra.mxu0 0.0
    %324 = vmatprep.subr.mxu0 0.0
    %325 = vmatpush1.msra.mxu0 0.0
    %326 = vmatprep.subr.mxu0 0.0
    %327 = vmatpush1.msra.mxu0 0.0
    %328 = vmatprep.subr.mxu0 0.0
    %329 = vmatpush1.msra.mxu0 0.0
    %330 = vmatprep.subr.mxu0 0.0
    %331 = vmatpush1.msra.mxu0 0.0
    %332 = vmatprep.subr.mxu0 0.0
    %333 = vmatpush1.msra.mxu0 0.0
    %334 = vmatprep.subr.mxu0 0.0
    %335 = vmatpush1.msra.mxu0 0.0
    %336 = vmatprep.subr.mxu0 0.0
    %337 = vmatpush1.msra.mxu0 0.0
    %338 = vmatprep.subr.mxu0 0.0
    %339 = vmatpush1.msra.mxu0 0.0
    %340 = vmatprep.subr.mxu0 0.0
    %341 = vmatpush1.msra.mxu0 0.0
    %342 = vmatprep.subr.mxu0 0.0
    %343 = vmatpush1.msra.mxu0 0.0
    %344 = vmatprep.subr.mxu0 0.0
    %345 = vmatpush1.msra.mxu0 0.0
    %346 = vmatprep.mubr.f32.mxu0 0.0
    %347 = vmatmul.mubr.f32.gmra.mrb[0].mxu0 %v280
    %v348 = vpop.f32.mrb[0].mxu0
    %v349 = vadd.f32 %v277, %v348
    %v350 = vpop.f32.mrb[0].mxu0
    %351 = vdwg.mxu0
    %v354 = vunpack.c.l.s4 1966171168
    %v355 = vunpack.c.0.s8 %v354
    %v356 = vlaneseq
    %v357 = vshrl.u32 %v356, 7
    %v358 = vsub.s32 %v355, %v357
    %v359 = vrot.slane %v349, %v358
    %v360 = vcombine.high %v359, %v359
    %v362 = vunpack.c.l.s4 1966171168
    %v363 = vunpack.c.0.s8 %v362
    %v364 = vlaneseq
    %v365 = vshrl.u32 %v364, 7
    %v366 = vsub.s32 %v363, %v365
    %v367 = vrot.slane %v359, %v366
    %v369 = vunpack.c.l.s4 1966171168
    %v370 = vunpack.c.0.s8 %v369
    %v371 = vlaneseq
    %v372 = vshrl.u32 %v371, 7
    %v373 = vsub.s32 %v370, %v372
    %v374 = vrot.slane %v360, %v373
    %v375 = vlaneseq
    %v376 = vshrl.u32 %v375, 7
    %v377 = vsub.s32 0, %v376
    %v378 = vrot.slane %v367, %v377
    %v379 = vlaneseq
    %v380 = vshrl.u32 %v379, 7
    %v381 = vsub.s32 0, %v380
    %v382 = vrot.slane %v374, %v381
    %v385 = vmul.f32 %v172, %v378
    %v386 = vmul.f32 %v177, %v382
    %v387 = vsel %vm98, %v385, 0.0
    %388 = vadd.xlane.f32.xlu0 %v387
    %v389 = vpop.xlane.xlu0 %388
    %v390 = vsel %vm98, %v386, 0.0
    %391 = vadd.xlane.f32.xlu0 %v390
    %v392 = vpop.xlane.xlu0 %391
    %v395 = vlaneseq
    %v396 = vand.u32 %v395, 127
    %v397 = vlaneseq
    %v398 = vshrl.u32 %v397, 7
    %v399 = vsub.s32 %v396, %v398
    %v400 = vrot.slane %v389, %v399
    %v401 = vlaneseq
    %v402 = vshrl.u32 %v401, 7
    %v403 = vsub.s32 %v396, %v402
    %v404 = vrot.slane %v392, %v403
    %vm405 = vcmask 1041409
    %v406 = vsel %vm405, %v404, %v400
    %vm408 = vcmask 58368
    %v409 = vsel %vm408, %v406, -inf
    %410 = vmax.xlane.f32.xlu0 %v409
    %v411 = vpop.xlane.xlu0 %410
    %v413 = vlaneseq
    %v414 = vshrl.u32 %v413, 7
    %v415 = vsub.s32 0, %v414
    %v416 = vrot.slane %v411, %v415
    %v417 = vlaneseq
    %v418 = vshrl.u32 %v417, 7
    %v419 = vsub.s32 1, %v418
    %v420 = vrot.slane %v411, %v419
    %v423 = vsub.f32 %v389, %v416
    %v424 = vsub.f32 %v392, %v420
    %v425 = vmul.f32 %v423, 1.442695
    %v426 = vpow.pop %v425
    %v427 = vmul.f32 %v424, 1.442695
    %v428 = vpow.pop %v427
    %431 = vset.pattern.permute.xlu0 0
    %432 = vperm.xlu0 %431, %v426
    %v433 = vpop.permute.xlu0 %432
    %434 = vset.pattern.permute.xlu0 0
    %435 = vperm.xlu0 %434, %v428
    %v436 = vpop.permute.xlu0 %435
    %v437 = vlaneseq
    %v438 = vshrl.u32 %v437, 7
    %v439 = vsub.s32 %v396, %v438
    %v440 = vrot.slane %v433, %v439
    %v441 = vlaneseq
    %v442 = vshrl.u32 %v441, 7
    %v443 = vsub.s32 %v396, %v442
    %v444 = vrot.slane %v436, %v443
    %v445 = vsel %vm405, %v444, %v440
    %v447 = vsel %vm408, %v445, 0.0
    %448 = vadd.xlane.f32.xlu0 %v447
    %v449 = vpop.xlane.xlu0 %448
    %v450 = vrcp.pop %v449
    %v452 = vlaneseq
    %v453 = vshrl.u32 %v452, 7
    %v454 = vsub.s32 0, %v453
    %v455 = vrot.slane %v450, %v454
    %v456 = vlaneseq
    %v457 = vshrl.u32 %v456, 7
    %v458 = vsub.s32 1, %v457
    %v459 = vrot.slane %v450, %v458
    %v462 = vmul.f32 %v426, %v455
    %v463 = vmul.f32 %v428, %v459
    %465 = vset.pattern.permute.xlu0 0
    %466 = vperm.xlu0 %465, %v462
    %v467 = vpop.permute.xlu0 %466
    %470 = vset.pattern.permute.xlu0 0
    %471 = vperm.xlu0 %470, %v463
    %v472 = vpop.permute.xlu0 %471
    %v474 = vmul.f32 %v467, %v258
    %v475 = vmul.f32 %v472, %v263
    %v476 = vsel %vm98, %v474, 0.0
    %v477 = vrot.slane %v476, 4
    %v478 = vadd.f32 %v476, %v477
    %v479 = vrot.slane %v478, 2
    %v480 = vadd.f32 %v478, %v479
    %v481 = vrot.slane %v480, 1
    %v482 = vadd.f32 %v480, %v481
    %v483 = vsel %vm98, %v475, 0.0
    %v484 = vrot.slane %v483, 4
    %v485 = vadd.f32 %v483, %v484
    %v486 = vrot.slane %v485, 2
    %v487 = vadd.f32 %v485, %v486
    %v488 = vrot.slane %v487, 1
    %v489 = vadd.f32 %v487, %v488
    %v492 = vsel %vm405, %v489, %v482
    %vm494 = vcmask 254976
    %495 = vst.msk [vmem:[#allocation10] sm:$0x3] %vm494, %v492
    %v496 = vlaneseq
    %v497 = vshrl.u32 %v496, 7
    %v498 = vsub.s32 %v396, %v497
    %v499 = vrot.slane %v467, %v498
    %v500 = vlaneseq
    %v501 = vshrl.u32 %v500, 7
    %v502 = vsub.s32 %v396, %v501
    %v503 = vrot.slane %v472, %v502
    %v504 = vsel %vm405, %v503, %v499
    %506 = vst.msk [vmem:[#allocation11] sm:$0x3] %vm408, %v504
    // Predicated region
    $region46: #{tpu_custom_call.1} parent=1 // pred_check
      _
    $region47: #{tpu_custom_call.1} parent=1 // pred_check_branch
      %508 = sbr.rel (0) target = $region49
    $region48: #{tpu_custom_call.1} parent=1 // pred_region
      %s510 = ssub.s32 32, 32
      %511 = vsyncadd [#allocation4], %s510
      %s513 = sshll.u32 [#allocation10], 4
      %s514 = int_to_ptr.vmem [resolvable:$true] %s513
      %516 = dma.vmem_to_hbm [thread:$0]  %s514, 32, %s7, [#allocation4]
    $region49: #{tpu_custom_call.1} parent=1 // pred_fallthru
      _
    // Predicated region
    $region50: #{tpu_custom_call.1} parent=1 // pred_check
      _
    $region51: #{tpu_custom_call.1} parent=1 // pred_check_branch
      %518 = sbr.rel (0) target = $region53
    $region52: #{tpu_custom_call.1} parent=1 // pred_region
      %s520 = ssub.s32 32, 32
      %521 = vsyncadd [#allocation12], %s520
      %s523 = sshll.u32 [#allocation11], 4
      %s524 = int_to_ptr.vmem [resolvable:$true] %s523
      %526 = dma.vmem_to_hbm [thread:$0]  %s524, 32, %s8, [#allocation12]
    $region53: #{tpu_custom_call.1} parent=1 // pred_fallthru
      _
    // Predicated region
    $region54: #{tpu_custom_call.1} parent=1 // pred_check
      _
    $region55: #{tpu_custom_call.1} parent=1 // pred_check_branch
      %528 = sbr.rel (0) target = $region57
    $region56: #{tpu_custom_call.1} parent=1 // pred_region
      %529 = dma.done [#allocation4], 32
    $region57: #{tpu_custom_call.1} parent=1 // pred_fallthru
      _
    // Predicated region
    $region58: #{tpu_custom_call.1} parent=1 // pred_check
      _
    $region59: #{tpu_custom_call.1} parent=1 // pred_check_branch
      %531 = sbr.rel (0) target = $region61
    $region60: #{tpu_custom_call.1} parent=1 // pred_region
      %532 = dma.done [#allocation12], 32
    $region61: #{tpu_custom_call.1} parent=1 // pred_fallthru
      _
    %533 = vsyncpa [#allocation3], 1
    %534 = vsyncpa [#allocation6], 1
    %535 = vsyncpa [#allocation9], 1
    %536 = vsyncpa [#allocation4], 1
    %537 = vsyncpa [#allocation12], 1

</llo_original>
